<compile_context>
chip_gen: v6e
topology: v6e:2x2x1
jax: 0.10.0
libtpu: 0.0.40
codegen_flags: <defaults>
</compile_context>

<pallas_src>
import functools

import jax
import jax.numpy as jnp
from jax.experimental import pallas as pl
from jax.experimental.pallas import tpu as pltpu

ALPHA = 0.25
GAMMA = 2

LANE = 128
SUBLANE = 8


def _round_up(x, k):
    return ((x + k - 1) // k) * k


def _focal_elementwise(x, t, alpha, gamma):
    """focal = alpha * (1 - exp(-bce))**gamma * bce with a numerically stable
    BCE-with-logits:  bce = max(x,0) - x*t + log1p(exp(-|x|))  (torch-compatible,
    weight=None)."""
    bce = jnp.maximum(x, 0.0) - x * t + jnp.log1p(jnp.exp(-jnp.abs(x)))
    pt = jnp.exp(-bce)
    one_m_pt = 1.0 - pt
    # integer gamma -> repeated multiply; avoid float pow (= log+exp on the EUP)
    if gamma == 2:
        mod = one_m_pt * one_m_pt
    elif float(gamma) == int(gamma) and gamma >= 0:
        mod = one_m_pt ** int(gamma)
    else:
        mod = one_m_pt ** gamma
    return (alpha * mod) * bce


def _focal_loss_kernel(x_ref, t_ref, o_ref, *, alpha, gamma, total_rows,
                       rows_per_block):
    p = pl.program_id(0)
    i = pl.program_id(1)

    # zero this parallel slice's resident (8,128) accumulator block
    @pl.when(i == 0)
    def _():
        o_ref[...] = jnp.zeros_like(o_ref)

    x = x_ref[...].astype(jnp.float32)
    t = t_ref[...].astype(jnp.float32)
    focal = _focal_elementwise(x, t, alpha, gamma)

    # Unclamped logical block index of this grid step.
    blk = p * pl.num_programs(1) + i

    # Only the last real (possibly ragged) row-block and clamped duplicate
    # blocks from the parallel split contain invalid rows.  Interior hot-path
    # blocks skip the iota / compare / select entirely.
    needs_mask = (blk + 1) * rows_per_block > total_rows

    @pl.when(jnp.logical_not(needs_mask))
    def _():
        # Pure-VPU vector accumulate; no cross-lane reduction in the hot loop.
        o_ref[...] += focal.reshape(-1, SUBLANE, LANE).sum(axis=0)

    @pl.when(needs_mask)
    def _():
        # Row-level block-local compare: <= 0 for fully-duplicate blocks,
        # partial for the ragged last block.  No int32 overflow hazard.
        rows_remaining = total_rows - blk * rows_per_block
        row_iota = jax.lax.broadcasted_iota(jnp.int32, focal.shape, 0)
        masked = jnp.where(row_iota < rows_remaining, focal, 0.0)
        o_ref[...] += masked.reshape(-1, SUBLANE, LANE).sum(axis=0)


def _detect_num_partials():
    """2 parallel slices only on v7x (2 TensorCores/chip); 1 elsewhere so
    single-TC chips never issue a duplicate masked-block DMA."""
    try:
        kind = jax.devices()[0].device_kind.lower()
    except Exception:
        return 1
    if "v7" in kind or "7x" in kind:
        return 2
    return 1


def focal_loss(logits, targets, *, alpha=ALPHA, gamma=GAMMA, block_rows=4096,
               num_partials=None):
    """Pallas TPU focal loss (mean reduction). Returns a scalar float32.

    Pass inputs in their native dtype (e.g. bf16); the kernel upcasts in VMEM.
    A wrapper-side astype would be a separate full-array HBM copy -- don't.
    """
    assert logits.shape == targets.shape
    total_elems = logits.size

    # Contiguous flatten: free (bitcast-style reshape).
    flat_x = logits.reshape(-1)
    flat_t = targets.reshape(-1)

    m = total_elems // LANE          # full 128-lane rows
    aligned = m * LANE
    rem = total_elems - aligned      # ragged tail, < 128 elements

    # Tail handled with plain jnp (trivially cheap); the Pallas kernel only
    # ever sees the 128-aligned prefix, so no full-array pad/concatenate.
    if rem:
        tail = jnp.sum(
            _focal_elementwise(
                flat_x[aligned:].astype(jnp.float32),
                flat_t[aligned:].astype(jnp.float32),
                float(alpha), gamma))
    else:
        tail = jnp.float32(0.0)

    if m == 0:
        # Entire input fits in the tail.
        return tail / jnp.float32(total_elems)

    # For aligned sizes this slice is an identity no-op; for misaligned sizes
    # only the aligned prefix is touched (no over-allocation + pad copy).
    x2 = flat_x[:aligned].reshape(m, LANE)
    t2 = flat_t[:aligned].reshape(m, LANE)

    if num_partials is None:
        num_partials = _detect_num_partials()
    num_partials = max(1, int(num_partials))

    # Big lane-dense tiles; clamp for small inputs; keep a multiple of 8 rows.
    # 4096 rows x 128 lanes f32 = 2 MiB/tile -> 8 MiB in flight double-buffered
    # for two inputs; fits comfortably under the raised 32 MiB VMEM limit on
    # v5e/v6e (128 MiB physical) and v7x (64 MiB physical).
    rows_per_block = min(int(block_rows), _round_up(m, SUBLANE))
    rows_per_block = _round_up(rows_per_block, SUBLANE)

    n_blocks = pl.cdiv(m, rows_per_block)
    chunks = pl.cdiv(n_blocks, num_partials)
    grid = (num_partials, chunks)

    def in_map(p, i):
        b = p * chunks + i
        # Clamp so we never issue a fully out-of-bounds DMA; any duplicate
        # block's contribution is zeroed by the in-kernel row mask.
        return (jnp.minimum(b, n_blocks - 1), 0)

    kernel = functools.partial(
        _focal_loss_kernel,
        alpha=float(alpha),
        gamma=gamma,
        total_rows=m,
        rows_per_block=rows_per_block,
    )

    partials = pl.pallas_call(
        kernel,
        out_shape=jax.ShapeDtypeStruct((num_partials * SUBLANE, LANE),
                                       jnp.float32),
        grid_spec=pltpu.PrefetchScalarGridSpec(
            num_scalar_prefetch=0,
            grid=grid,
            in_specs=[
                pl.BlockSpec((rows_per_block, LANE), in_map),
                pl.BlockSpec((rows_per_block, LANE), in_map),
            ],
            out_specs=pl.BlockSpec((SUBLANE, LANE), lambda p, i: (p, 0)),
        ),
        compiler_params=pltpu.CompilerParams(
            dimension_semantics=("parallel", "arbitrary"),
            vmem_limit_bytes=32 * 1024 * 1024,
        ),
    )(x2, t2)

    # Single tiny cross-lane reduce (num_partials*8*128 f32) outside the loop.
    return (jnp.sum(partials) + tail) / jnp.float32(total_elems)


def focal_loss_ref(logits, targets, alpha=ALPHA, gamma=GAMMA):
    return jnp.mean(
        _focal_elementwise(logits.astype(jnp.float32),
                           targets.astype(jnp.float32),
                           float(alpha), gamma))


if __name__ == "__main__":
    key = jax.random.PRNGKey(0)
    kx, kt = jax.random.split(key)

    # small shapes consistent with an NCHW prediction map
    x = jax.random.normal(kx, (2, 4, 16, 16), dtype=jnp.float32)
    t = (jax.random.uniform(kt, (2, 4, 16, 16)) > 0.5).astype(jnp.float32)

    loss = focal_loss(x, t)
    loss = jax.block_until_ready(loss)

    ref = focal_loss_ref(x, t)
    assert jnp.allclose(loss, ref, rtol=1e-5, atol=1e-6), (loss, ref)

    print("KERNEL_OK")
</pallas_src>

<mosaic_0001>
module attributes {stable_mosaic.version = 11 : i64} {
  func.func @_focal_loss_kernel(%arg0: i32, %arg1: i32, %arg2: memref<16x128xf32, #tpu.memory_space<vmem>>, %arg3: memref<16x128xf32, #tpu.memory_space<vmem>>, %arg4: memref<8x128xf32, #tpu.memory_space<vmem>>) attributes {dimension_semantics = [#tpu.dimension_semantics<parallel>, #tpu.dimension_semantics<arbitrary>], iteration_bounds = array<i64: 1, 1>, scalar_prefetch = 0 : i64, scratch_operands = 0 : i64, tpu.core_type = #tpu.core_type<tc>, window_params = [{transform_indices = @transform_0, window_bounds = array<i64: 16, 128>}, {transform_indices = @transform_1, window_bounds = array<i64: 16, 128>}, {transform_indices = @transform_2, window_bounds = array<i64: 8, 128>}]} {
    %c0_i32 = arith.constant 0 : i32
    %0 = arith.cmpi eq, %arg1, %c0_i32 : i32
    %1 = arith.extui %0 : i1 to i32
    %c0_i32_0 = arith.constant 0 : i32
    %2 = arith.cmpi ne, %1, %c0_i32_0 : i32
    scf.if %2 {
      %cst_12 = arith.constant 0.000000e+00 : f32
      %34 = vector.broadcast %cst_12 : f32 to vector<8x128xf32>
      %c0_13 = arith.constant 0 : index
      %c0_14 = arith.constant 0 : index
      %35 = vector.load %arg4[%c0_13, %c0_14] : memref<8x128xf32, #tpu.memory_space<vmem>>, vector<8x128xf32>
      tpu.vector_store %arg4[%c0_13, %c0_14], %34 {strides = array<i32>} : memref<8x128xf32, #tpu.memory_space<vmem>>, vector<8x128xf32>,
    } else {
    }
    %c0 = arith.constant 0 : index
    %c0_1 = arith.constant 0 : index
    %3 = vector.load %arg2[%c0, %c0_1] : memref<16x128xf32, #tpu.memory_space<vmem>>, vector<16x128xf32>
    %c0_2 = arith.constant 0 : index
    %c0_3 = arith.constant 0 : index
    %4 = vector.load %arg3[%c0_2, %c0_3] : memref<16x128xf32, #tpu.memory_space<vmem>>, vector<16x128xf32>
    %cst = arith.constant 0.000000e+00 : f32
    %5 = vector.broadcast %cst : f32 to vector<16x128xf32>
    %6 = arith.maximumf %3, %5 : vector<16x128xf32>
    %7 = arith.mulf %3, %4 : vector<16x128xf32>
    %8 = arith.subf %6, %7 : vector<16x128xf32>
    %9 = math.absf %3 : vector<16x128xf32>
    %cst_4 = arith.constant 0.000000e+00 : f32
    %10 = vector.broadcast %cst_4 : f32 to vector<16x128xf32>
    %11 = arith.subf %10, %9 : vector<16x128xf32>
    %12 = math.exp %11 : vector<16x128xf32>
    %13 = math.log1p %12 : vector<16x128xf32>
    %14 = arith.addf %8, %13 : vector<16x128xf32>
    %cst_5 = arith.constant 0.000000e+00 : f32
    %15 = vector.broadcast %cst_5 : f32 to vector<16x128xf32>
    %16 = arith.subf %15, %14 : vector<16x128xf32>
    %17 = math.exp %16 : vector<16x128xf32>
    %cst_6 = arith.constant 1.000000e+00 : f32
    %18 = vector.broadcast %cst_6 : f32 to vector<16x128xf32>
    %19 = arith.subf %18, %17 : vector<16x128xf32>
    %20 = arith.mulf %19, %19 : vector<16x128xf32>
    %cst_7 = arith.constant 2.500000e-01 : f32
    %21 = vector.broadcast %cst_7 : f32 to vector<16x128xf32>
    %22 = arith.mulf %21, %20 : vector<16x128xf32>
    %23 = arith.mulf %22, %14 : vector<16x128xf32>
    %c1_i32 = arith.constant 1 : i32
    %24 = arith.muli %arg0, %c1_i32 : i32
    %25 = arith.addi %24, %arg1 : i32
    %c1_i32_8 = arith.constant 1 : i32
    %26 = arith.addi %25, %c1_i32_8 : i32
    %c16_i32 = arith.constant 16 : i32
    %27 = arith.muli %26, %c16_i32 : i32
    %c16_i32_9 = arith.constant 16 : i32
    %28 = arith.cmpi sgt, %27, %c16_i32_9 : i32
    %true = arith.constant true
    %29 = arith.xori %28, %true : i1
    %30 = arith.extui %29 : i1 to i32
    %c0_i32_10 = arith.constant 0 : i32
    %31 = arith.cmpi ne, %30, %c0_i32_10 : i32
    scf.if %31 {
      %c0_12 = arith.constant 0 : index
      %c0_13 = arith.constant 0 : index
      %34 = vector.load %arg4[%c0_12, %c0_13] : memref<8x128xf32, #tpu.memory_space<vmem>>, vector<8x128xf32>
      %35 = vector.shape_cast %23 : vector<16x128xf32> to vector<2x8x128xf32>
      %cst_14 = arith.constant dense<0.000000e+00> : vector<8x128xf32>
      %36 = vector.multi_reduction <add>, %35, %cst_14 [0] : vector<2x8x128xf32> to vector<8x128xf32>
      %37 = arith.addf %34, %36 : vector<8x128xf32>
      %c0_15 = arith.constant 0 : index
      %c0_16 = arith.constant 0 : index
      %38 = vector.load %arg4[%c0_15, %c0_16] : memref<8x128xf32, #tpu.memory_space<vmem>>, vector<8x128xf32>
      tpu.vector_store %arg4[%c0_15, %c0_16], %37 {strides = array<i32>} : memref<8x128xf32, #tpu.memory_space<vmem>>, vector<8x128xf32>,
    } else {
    }
    %32 = arith.extui %28 : i1 to i32
    %c0_i32_11 = arith.constant 0 : i32
    %33 = arith.cmpi ne, %32, %c0_i32_11 : i32
    scf.if %33 {
      %c16_i32_12 = arith.constant 16 : i32
      %34 = arith.muli %25, %c16_i32_12 : i32
      %c16_i32_13 = arith.constant 16 : i32
      %35 = arith.subi %c16_i32_13, %34 : i32
      %36 = tpu.iota {dimensions = array<i32: 0>} : vector<16x128xi32>
      %37 = vector.broadcast %35 : i32 to vector<16x128xi32>
      %38 = arith.cmpi slt, %36, %37 : vector<16x128xi32>
      %cst_14 = arith.constant 0.000000e+00 : f32
      %39 = vector.broadcast %cst_14 : f32 to vector<16x128xf32>
      %40 = arith.select %38, %23, %39 : vector<16x128xi1>, vector<16x128xf32>
      %c0_15 = arith.constant 0 : index
      %c0_16 = arith.constant 0 : index
      %41 = vector.load %arg4[%c0_15, %c0_16] : memref<8x128xf32, #tpu.memory_space<vmem>>, vector<8x128xf32>
      %42 = vector.shape_cast %40 : vector<16x128xf32> to vector<2x8x128xf32>
      %cst_17 = arith.constant dense<0.000000e+00> : vector<8x128xf32>
      %43 = vector.multi_reduction <add>, %42, %cst_17 [0] : vector<2x8x128xf32> to vector<8x128xf32>
      %44 = arith.addf %41, %43 : vector<8x128xf32>
      %c0_18 = arith.constant 0 : index
      %c0_19 = arith.constant 0 : index
      %45 = vector.load %arg4[%c0_18, %c0_19] : memref<8x128xf32, #tpu.memory_space<vmem>>, vector<8x128xf32>
      tpu.vector_store %arg4[%c0_18, %c0_19], %44 {strides = array<i32>} : memref<8x128xf32, #tpu.memory_space<vmem>>, vector<8x128xf32>,
    } else {
    }
    return
  }
  func.func @transform_0(%arg0: i32, %arg1: i32) -> (i32, i32) {
    %c1_i32 = arith.constant 1 : i32
    %0 = arith.muli %arg0, %c1_i32 : i32
    %1 = arith.addi %0, %arg1 : i32
    %c0_i32 = arith.constant 0 : i32
    %2 = arith.minsi %1, %c0_i32 : i32
    %c0_i32_0 = arith.constant 0 : i32
    %c0_i32_1 = arith.constant 0 : i32
    return %2, %c0_i32_0 : i32, i32
  }
  func.func @transform_1(%arg0: i32, %arg1: i32) -> (i32, i32) {
    %c1_i32 = arith.constant 1 : i32
    %0 = arith.muli %arg0, %c1_i32 : i32
    %1 = arith.addi %0, %arg1 : i32
    %c0_i32 = arith.constant 0 : i32
    %2 = arith.minsi %1, %c0_i32 : i32
    %c0_i32_0 = arith.constant 0 : i32
    %c0_i32_1 = arith.constant 0 : i32
    return %2, %c0_i32_0 : i32, i32
  }
  func.func @transform_2(%arg0: i32, %arg1: i32) -> (i32, i32) {
    %c0_i32 = arith.constant 0 : i32
    %c0_i32_0 = arith.constant 0 : i32
    return %arg0, %c0_i32 : i32, i32
  }
}

</mosaic_0001>

<llo_original>
// kernel: tpu_custom_call.1
$region0: #{tpu_custom_call.1}
  #allocation0 [shape = 'u32[]', space=smem, size = 0x4, offset = 0x4, fixed_abs, tag = 'smem constant byte address 0x4 - core index']
  #allocation1 [shape = 'u32[144,128]{1,0:T(1,128)}', space=vmem, size = 0x12000, scoped, tag = 'internal scratch']
  %s0 = inlined_call_operand.hbm [shape: f32[16,128], index: 0, kind: input, shape index: {}]
  %s1 = inlined_call_operand.hbm [shape: f32[16,128], index: 1, kind: input, shape index: {}]
  %s2 = inlined_call_operand.hbm [shape: f32[8,128], index: 2, kind: output, shape index: {}]
  %s3 = sld [smem:[#allocation0]]
  $region38: #{tpu_custom_call.1} parent=0
    _
  %s5 = ssub.s32 1, %s3
  %s6 = scalar_select 0, %s5, %s3
  $region1: #{tpu_custom_call.1} parent=0
    #allocation2 [shape = 'u8[8192]{0}', space=vmem, size = 0x2000, scoped, tag = 'input window, operand 0, single buffered']
    #allocation3 [shape = 's32[1]{0}', space=sflag, size = 0x4, scoped, tag = 'scoped memory for tpu_custom_call.1']
    #allocation4 [shape = 's32[1]{0}', space=sflag, size = 0x4, scoped, tag = 'scoped memory for tpu_custom_call.1']
    #allocation5 [shape = 'u8[8192]{0}', space=vmem, size = 0x2000, scoped, tag = 'input window, operand 1, single buffered']
    #allocation6 [shape = 's32[1]{0}', space=sflag, size = 0x4, scoped, tag = 'scoped memory for tpu_custom_call.1']
    #allocation7 [shape = 'u8[4096]{0}', space=vmem, size = 0x1000, scoped, tag = 'output window, operand 0, single buffered']
    %7 = vsyncpa [#allocation3], 0
    %8 = vsyncpa [#allocation6], 0
    %9 = vsyncpa [#allocation4], 0
    // Predicated region
    $region2: #{tpu_custom_call.1} parent=1 // pred_check
      _
    $region3: #{tpu_custom_call.1} parent=1 // pred_check_branch
      %11 = sbr.rel (0) target = $region5
    $region4: #{tpu_custom_call.1} parent=1 // pred_region
      %s12 = sadd.s32 0, 0
      %p13 = scmp.lt.s32.totalorder %s12, 0
      %s14 = scalar_select %p13, %s12, 0
      %s15 = smul.u32 2, %s14
      %s17 = ssub.s32 256, 256
      %18 = vsyncadd [#allocation3], %s17
      %s19 = smul.addr %s15, 128
      %s20 = scalar_lea.hbm %s0, %s19
      %s21 = sshll.u32 [#allocation2], 4
      %s22 = int_to_ptr.vmem [resolvable:$true] %s21
      %27 = dma.hbm_to_vmem [thread:$0]  %s20, 256, %s22, [#allocation3], 128, 128, 8
    $region5: #{tpu_custom_call.1} parent=1 // pred_fallthru
      _
    // Predicated region
    $region6: #{tpu_custom_call.1} parent=1 // pred_check
      _
    $region7: #{tpu_custom_call.1} parent=1 // pred_check_branch
      %29 = sbr.rel (0) target = $region9
    $region8: #{tpu_custom_call.1} parent=1 // pred_region
      %s30 = sadd.s32 0, 0
      %p31 = scmp.lt.s32.totalorder %s30, 0
      %s32 = scalar_select %p31, %s30, 0
      %s33 = smul.u32 2, %s32
      %s35 = ssub.s32 256, 256
      %36 = vsyncadd [#allocation6], %s35
      %s37 = smul.addr %s33, 128
      %s38 = scalar_lea.hbm %s1, %s37
      %s39 = sshll.u32 [#allocation5], 4
      %s40 = int_to_ptr.vmem [resolvable:$true] %s39
      %45 = dma.hbm_to_vmem [thread:$0]  %s38, 256, %s40, [#allocation6], 128, 128, 8
    $region9: #{tpu_custom_call.1} parent=1 // pred_fallthru
      _
    // Predicated region
    $region10: #{tpu_custom_call.1} parent=1 // pred_check
      _
    $region11: #{tpu_custom_call.1} parent=1 // pred_check_branch
      %47 = sbr.rel (0) target = $region13
    $region12: #{tpu_custom_call.1} parent=1 // pred_region
      %48 = dma.done [#allocation3], 256
    $region13: #{tpu_custom_call.1} parent=1 // pred_fallthru
      _
    // Predicated region
    $region14: #{tpu_custom_call.1} parent=1 // pred_check
      _
    $region15: #{tpu_custom_call.1} parent=1 // pred_check_branch
      %50 = sbr.rel (0) target = $region17
    $region16: #{tpu_custom_call.1} parent=1 // pred_region
      %51 = dma.done [#allocation6], 256
    $region17: #{tpu_custom_call.1} parent=1 // pred_fallthru
      _
    %s52 = sadd.s32 0, 0
    %p53 = scmp.lt.s32.totalorder %s52, 0
    %s54 = scalar_select %p53, %s52, 0
    %s55 = smul.u32 2, %s54
    %s56 = sadd.s32 0, 0
    %p57 = scmp.lt.s32.totalorder %s56, 0
    %s58 = scalar_select %p57, %s56, 0
    %s59 = smul.u32 2, %s58
    %p60 = scmp.eq.s32.totalorder 0, 0
    // Predicated region
    $region18: #{tpu_custom_call.1} parent=1 // pred_check
      %p61 = pneg %p60
    $region19: #{tpu_custom_call.1} parent=1 // pred_check_branch
      %63 = sbr.rel (%p61) target = $region21
    $region20: #{tpu_custom_call.1} parent=1 // pred_region
      %64 = vst [vmem:[#allocation7] sm:$0xff] 0.0
    $region21: #{tpu_custom_call.1} parent=1 // pred_fallthru
      _
    %v65 = vld [vmem:[#allocation2] sm:$0xff]
    %v66 = vld [vmem:[#allocation2 + $0x8] sm:$0xff]
    %v67 = vld [vmem:[#allocation5] sm:$0xff]
    %v68 = vld [vmem:[#allocation5 + $0x8] sm:$0xff]
    %v69 = vmax.f32 %v65, 0.0
    %v70 = vmax.f32 %v66, 0.0
    %v71 = vmul.f32 %v65, %v67
    %v72 = vmul.f32 %v66, %v68
    %v73 = vsub.f32 %v69, %v71
    %v74 = vsub.f32 %v70, %v72
    %v75 = vand.u32 2147483647, %v65
    %v76 = vand.u32 2147483647, %v66
    %v77 = vsub.f32 0.0, %v75
    %v78 = vsub.f32 0.0, %v76
    %v79 = vmul.f32 %v77, 1.442695
    %v80 = vpow.pop %v79
    %v81 = vmul.f32 %v78, 1.442695
    %v82 = vpow.pop %v81
    %v83 = vadd.f32 %v80, 1.0
    %v84 = vlog2.pop %v83
    %v85 = vmul.f32 %v84, 0.6931472
    %v86 = vmul.f32 -0.5, %v80
    %v87 = vadd.f32 %v86, 1.0
    %v88 = vmul.f32 %v87, %v80
    %v89 = vand.u32 2147483647, %v80
    %vm90 = vcmp.lt.f32.partialorder %v89, 0.0004427343
    %v91 = vsel %vm90, %v88, %v85
    %v92 = vadd.f32 %v82, 1.0
    %v93 = vlog2.pop %v92
    %v94 = vmul.f32 %v93, 0.6931472
    %v95 = vmul.f32 -0.5, %v82
    %v96 = vadd.f32 %v95, 1.0
    %v97 = vmul.f32 %v96, %v82
    %v98 = vand.u32 2147483647, %v82
    %vm99 = vcmp.lt.f32.partialorder %v98, 0.0004427343
    %v100 = vsel %vm99, %v97, %v94
    %v101 = vadd.f32 %v73, %v91
    %v102 = vadd.f32 %v74, %v100
    %v103 = vsub.f32 0.0, %v101
    %v104 = vsub.f32 0.0, %v102
    %v105 = vmul.f32 %v103, 1.442695
    %v106 = vpow.pop %v105
    %v107 = vmul.f32 %v104, 1.442695
    %v108 = vpow.pop %v107
    %v109 = vsub.f32 1.0, %v106
    %v110 = vsub.f32 1.0, %v108
    %v111 = vmul.f32 %v109, %v109
    %v112 = vmul.f32 %v110, %v110
    %v113 = vmul.f32 %v111, 0.25
    %v114 = vmul.f32 %v112, 0.25
    %v115 = vmul.f32 %v113, %v101
    %v116 = vmul.f32 %v114, %v102
    %s117 = sadd.s32 0, 0
    %s118 = sadd.s32 %s117, 1
    %s119 = smul.u32 %s118, 16
    %p120 = scmp.gt.s32.totalorder %s119, 16
    %p121 = scmp.le.s32.totalorder %s119, 16
    // Predicated region
    $region22: #{tpu_custom_call.1} parent=1 // pred_check
      %p122 = pneg %p121
    $region23: #{tpu_custom_call.1} parent=1 // pred_check_branch
      %124 = sbr.rel (%p122) target = $region25
    $region24: #{tpu_custom_call.1} parent=1 // pred_region
      %v125 = vld [vmem:[#allocation7] sm:$0xff]
      %v126 = vadd.f32 %v115, %v116
      %v127 = vadd.f32 %v125, %v126
      %128 = vst [vmem:[#allocation7] sm:$0xff] %v127
    $region25: #{tpu_custom_call.1} parent=1 // pred_fallthru
      _
    // Predicated region
    $region26: #{tpu_custom_call.1} parent=1 // pred_check
      %p129 = pneg %p120
    $region27: #{tpu_custom_call.1} parent=1 // pred_check_branch
      %131 = sbr.rel (%p129) target = $region29
    $region28: #{tpu_custom_call.1} parent=1 // pred_region
      %s132 = smul.u32 %s117, 16
      %s133 = ssub.s32 16, %s132
      %v134 = vlaneseq
      %v135 = vshrl.u32 %v134, 7
      %v136 = vadd.s32 %v135, 8
      %v137 = vstv %s133
      %vm138 = vcmp.lt.s32.totalorder %v135, %v137
      %vm139 = vcmp.lt.s32.totalorder %v136, %v137
      %v140 = vsel %vm138, %v115, 0.0
      %v141 = vsel %vm139, %v116, 0.0
      %v142 = vld [vmem:[#allocation7] sm:$0xff]
      %v143 = vadd.f32 %v140, %v141
      %v144 = vadd.f32 %v142, %v143
      %145 = vst [vmem:[#allocation7] sm:$0xff] %v144
    $region29: #{tpu_custom_call.1} parent=1 // pred_fallthru
      _
    // Predicated region
    $region30: #{tpu_custom_call.1} parent=1 // pred_check
      _
    $region31: #{tpu_custom_call.1} parent=1 // pred_check_branch
      %147 = sbr.rel (0) target = $region33
    $region32: #{tpu_custom_call.1} parent=1 // pred_region
      %s149 = ssub.s32 128, 128
      %150 = vsyncadd [#allocation4], %s149
      %s152 = sshll.u32 [#allocation7], 4
      %s153 = int_to_ptr.vmem [resolvable:$true] %s152
      %155 = dma.vmem_to_hbm [thread:$0]  %s153, 128, %s2, [#allocation4]
    $region33: #{tpu_custom_call.1} parent=1 // pred_fallthru
      _
    // Predicated region
    $region34: #{tpu_custom_call.1} parent=1 // pred_check
      _
    $region35: #{tpu_custom_call.1} parent=1 // pred_check_branch
      %157 = sbr.rel (0) target = $region37
    $region36: #{tpu_custom_call.1} parent=1 // pred_region
      %158 = dma.done [#allocation4], 128
    $region37: #{tpu_custom_call.1} parent=1 // pred_fallthru
      _
    %159 = vsyncpa [#allocation3], 1
    %160 = vsyncpa [#allocation6], 1
    %161 = vsyncpa [#allocation4], 1

</llo_original>
